<compile_context>
chip_gen: v6e
topology: v6e:2x2x1
jax: 0.10.0
libtpu: 0.0.40
codegen_flags: <defaults>
</compile_context>

<pallas_src>
import functools

import jax
import jax.numpy as jnp
import numpy as np
from jax import lax
from jax.experimental import pallas as pl
from jax.experimental.pallas import tpu as pltpu


def _cdiv(a, b):
    return -(-a // b)


# --------------------------------------------------------------------------------------
# Kernel
# --------------------------------------------------------------------------------------
def conv_block_kernel(x_ref, w_ref, shift_ref, o_ref, *, kh_size, h_out, b_tile):
    """One grid step == b_tile batch images.

    x_ref:     (b_tile, Hp_pad, L)        padded input, (W, C_in) flattened + lane-padded (bf16)
    w_ref:     (KH*L, W_out*C_out)        structured conv weight, BN scale folded in (bf16)
    shift_ref: (1, W_out*C_out)           BN shift in the lane-dense output layout (f32)
    o_ref:     (b_tile, H_out, W_out*C_out) lane-dense output (f32)
    """
    x3 = x_ref[...]                                             # (b_tile, Hp_pad, L)
    lanes = x3.shape[-1]
    # Stack the KH row-shifted windows along lanes -> (b_tile, H_out, KH*L).
    # Each window is a full 128-lane tile, so the lane-concat offsets are 128-aligned.
    # The r=1,2 slices are sublane shifts (XLU) -- cheap filler next to the MXU push.
    rows = [x3[:, r:r + h_out, :] for r in range(kh_size)]
    lhs3 = rows[0] if kh_size == 1 else jnp.concatenate(rows, axis=-1)
    # Flatten batch into the matmul M dimension: one big MXU matmul per grid step.
    lhs = lhs3.reshape(b_tile * h_out, kh_size * lanes)
    y = jnp.dot(lhs, w_ref[...], preferred_element_type=jnp.float32)
    # Fused BN shift + ReLU on full-width f32 vregs, then an unmasked lane-dense store.
    y = jnp.maximum(y + shift_ref[...], 0.0)
    o_ref[...] = y.reshape(b_tile, h_out, -1).astype(o_ref.dtype)


# --------------------------------------------------------------------------------------
# Init-time precompute (eval-mode conv/BN params are static -> do this once, not per call)
# --------------------------------------------------------------------------------------
def precompute_conv_block_params(w_oihw, gamma, beta, running_mean, running_var,
                                 *, in_shape_hw, stride=1, padding=1, bn_eps=1e-5,
                                 compute_dtype=jnp.bfloat16):
    """Builds (r_mat, shift_tiled, meta) once.  Pass r_mat/shift_tiled into the forward."""
    # TODO(synk): only the stride=1, dilation=1, groups=1, bias=False, use_bn=True,
    # ReLU-activation configuration of the generic ConvBlock is implemented here.
    assert stride == 1, "this ConvBlock instance uses stride=1"
    c_out, c_in, kh, kw = w_oihw.shape
    h, w = in_shape_hw

    hp, wp = h + 2 * padding, w + 2 * padding
    h_out = hp - kh + 1
    w_out = wp - kw + 1
    row_width = wp * c_in                                   # real lanes per padded row
    row_lanes = _cdiv(row_width, 128) * 128                 # lane-pad to a 128 multiple
    out_lanes = w_out * c_out                               # 128 for this instance
    assert row_width <= row_lanes

    # ---- fold eval-mode BatchNorm into the conv ----
    scale = (gamma / jnp.sqrt(running_var + bn_eps)).astype(jnp.float32)   # (C_out,)
    shift = (beta - running_mean * scale).astype(jnp.float32)              # (C_out,)
    w_hwio = jnp.transpose(w_oihw, (2, 3, 1, 0)).astype(jnp.float32)       # (KH,KW,Cin,Cout)
    w_hwio = w_hwio * scale[None, None, None, :]

    # ---- structured (Toeplitz) weight matrix R: (KH*row_lanes, W_out*C_out) ----
    # R[kh*row_lanes + wp*C_in + ci, w*C_out + co] = Wscaled[kh, wp - w, ci, co] when
    # 0 <= wp - w < KW, else 0; the lane-pad rows are zero.  With the kernel's
    # lhs[.., kh*row_lanes + j] = x_in[.., row + kh, j] this makes lhs @ R the convolution.
    sel = np.zeros((kw, w_out, wp), dtype=np.float32)
    for kwi in range(kw):
        for wi in range(w_out):
            sel[kwi, wi, wi + kwi] = 1.0
    r5 = jnp.einsum("kwp,hkio->hpiwo", jnp.asarray(sel), w_hwio)    # (KH,Wp,Cin,Wout,Cout)
    r_mat = r5.reshape(kh, row_width, out_lanes)
    r_mat = jnp.pad(r_mat, ((0, 0), (0, row_lanes - row_width), (0, 0)))
    r_mat = r_mat.reshape(kh * row_lanes, out_lanes).astype(compute_dtype)

    shift_tiled = jnp.tile(shift, w_out).reshape(1, out_lanes)      # (1, 128) f32

    meta = dict(c_in=c_in, c_out=c_out, kh=kh, kw=kw, h=h, w=w, hp=hp, wp=wp,
                h_out=h_out, w_out=w_out, row_width=row_width, row_lanes=row_lanes,
                out_lanes=out_lanes, padding=padding, compute_dtype=compute_dtype)
    return jax.device_put(r_mat), jax.device_put(shift_tiled), meta


def _default_b_tile(n, h_out):
    # Target per-step M = b_tile*h_out >= 256 (fills the v6e/v7x MXU) while keeping at
    # least 2 grid steps when the batch is large enough so v7x's two TCs both get work.
    b_for_m = max(1, _cdiv(256, h_out))
    if n <= b_for_m:
        return n                    # tiny batch: one grid step (zero per-step overhead)
    if n <= 2 * b_for_m:
        return _cdiv(n, 2)          # two steps, one per TensorCore on v7x
    return b_for_m                  # many full-M steps (>= 2, so v7x still splits)


# --------------------------------------------------------------------------------------
# Forward passes
# --------------------------------------------------------------------------------------
def conv_block_forward_nhwc(x_nhwc, r_mat, shift_tiled, meta, *, b_tile=None):
    """Hot path: NHWC in -> NHWC out.  Only cheap, fusable glue around the pallas_call."""
    n, h, w, c_in = x_nhwc.shape
    assert (h, w, c_in) == (meta["h"], meta["w"], meta["c_in"])
    kh, pad = meta["kh"], meta["padding"]
    hp, wp = meta["hp"], meta["wp"]
    h_out, w_out, c_out = meta["h_out"], meta["w_out"], meta["c_out"]
    row_width, row_lanes, out_lanes = meta["row_width"], meta["row_lanes"], meta["out_lanes"]
    cdt = meta["compute_dtype"]

    if b_tile is None:
        b_tile = _default_b_tile(n, h_out)
    n_pad = _cdiv(n, b_tile) * b_tile
    # Keep the bf16 packed-sublane layout clean: pad Hp up to a multiple of 16 rows.
    hp_pad = _cdiv(hp, 16) * 16

    # ---- glue (one small XLA fusion): zero-pad, flatten (W, C_in) to lanes, cast bf16 ----
    x_p = jnp.pad(x_nhwc, ((0, n_pad - n), (pad, pad + hp_pad - hp), (pad, pad), (0, 0)))
    x_rows = x_p.reshape(n_pad, hp_pad, wp * c_in)
    x_in = jnp.pad(x_rows, ((0, 0), (0, 0), (0, row_lanes - row_width))).astype(cdt)

    kernel = functools.partial(conv_block_kernel, kh_size=kh, h_out=h_out, b_tile=b_tile)

    bytes_in = (x_in.size * x_in.dtype.itemsize
                + r_mat.size * r_mat.dtype.itemsize
                + shift_tiled.size * shift_tiled.dtype.itemsize)
    cost = pl.CostEstimate(
        flops=2 * n_pad * h_out * (kh * row_lanes) * out_lanes,
        transcendentals=0,
        bytes_accessed=bytes_in + n_pad * h_out * out_lanes * 4,
    )

    out = pl.pallas_call(
        kernel,
        out_shape=jax.ShapeDtypeStruct((n_pad, h_out, out_lanes), jnp.float32),
        grid_spec=pltpu.PrefetchScalarGridSpec(
            num_scalar_prefetch=0,
            grid=(n_pad // b_tile,),            # batch axis: "parallel" -> 2 TCs on v7x
            in_specs=[
                pl.BlockSpec((b_tile, hp_pad, row_lanes), lambda b: (b, 0, 0)),
                # constant block indices -> weight / shift are DMA'd once, not per step
                pl.BlockSpec((kh * row_lanes, out_lanes), lambda b: (0, 0)),
                pl.BlockSpec((1, out_lanes), lambda b: (0, 0)),
            ],
            out_specs=pl.BlockSpec((b_tile, h_out, out_lanes), lambda b: (b, 0, 0)),
        ),
        compiler_params=pltpu.CompilerParams(dimension_semantics=("parallel",)),
        cost_estimate=cost,
    )(x_in, r_mat, shift_tiled)

    # lane-dense -> NHWC (cheap reshape; stays fused with the consumer under jit)
    return out[:n].reshape(n, h_out, w_out, c_out)


def conv_block_forward_nchw(x_nchw, r_mat, shift_tiled, meta, *, b_tile=None):
    """Module-faithful wrapper (NCHW in/out), matching the original PyTorch ConvBlock.
    Prefer conv_block_forward_nhwc when chaining ConvBlocks (no HBM transpose passes)."""
    x_nhwc = jnp.transpose(x_nchw, (0, 2, 3, 1))
    out_nhwc = conv_block_forward_nhwc(x_nhwc, r_mat, shift_tiled, meta, b_tile=b_tile)
    return jnp.transpose(out_nhwc, (0, 3, 1, 2))


# --------------------------------------------------------------------------------------
# Pure-JAX reference (lax conv) for correctness checking
# --------------------------------------------------------------------------------------
def reference_forward(x_nchw, w_oihw, gamma, beta, running_mean, running_var,
                      *, padding=1, bn_eps=1e-5):
    y = lax.conv_general_dilated(
        x_nchw, w_oihw,
        window_strides=(1, 1),
        padding=((padding, padding), (padding, padding)),
        dimension_numbers=("NCHW", "OIHW", "NCHW"),
    )
    scale = gamma / jnp.sqrt(running_var + bn_eps)
    shift = beta - running_mean * scale
    y = y * scale[None, :, None, None] + shift[None, :, None, None]
    return jnp.maximum(y, 0.0)


if __name__ == "__main__":
    # ConvBlock(in_channels=4, out_channels=8, kernel_size=3, stride=1, padding=1)
    N, C_IN, H, W = 2, 4, 16, 16
    C_OUT, K = 8, 3
    BN_EPS = 1e-5

    key = jax.random.PRNGKey(0)
    kx, kw_, kg, kb, km, kv = jax.random.split(key, 6)

    x = jax.random.normal(kx, (N, C_IN, H, W), dtype=jnp.float32)
    # Conv2d weight (bias=False): (C_out, C_in, KH, KW)
    weight = jax.random.normal(kw_, (C_OUT, C_IN, K, K), dtype=jnp.float32) * 0.1
    # BatchNorm2d params + running stats (eval-mode BN).
    gamma = 1.0 + 0.1 * jax.random.normal(kg, (C_OUT,), dtype=jnp.float32)
    beta = 0.1 * jax.random.normal(kb, (C_OUT,), dtype=jnp.float32)
    running_mean = 0.1 * jax.random.normal(km, (C_OUT,), dtype=jnp.float32)
    running_var = jnp.abs(1.0 + 0.1 * jax.random.normal(kv, (C_OUT,), dtype=jnp.float32))

    # ---- model-init-time precompute (outside the per-call hot path) ----
    r_mat, shift_tiled, meta = precompute_conv_block_params(
        weight, gamma, beta, running_mean, running_var,
        in_shape_hw=(H, W), stride=1, padding=1, bn_eps=BN_EPS)

    # ---- NHWC hot path (the optimized, chainable API) ----
    fwd_nhwc = jax.jit(functools.partial(conv_block_forward_nhwc, meta=meta))
    x_nhwc = jnp.transpose(x, (0, 2, 3, 1))
    out_nhwc = jax.block_until_ready(fwd_nhwc(x_nhwc, r_mat, shift_tiled))

    # ---- NCHW module-equivalent wrapper (original PyTorch interface) ----
    fwd_nchw = jax.jit(functools.partial(conv_block_forward_nchw, meta=meta))
    out_nchw = jax.block_until_ready(fwd_nchw(x, r_mat, shift_tiled))

    ref = reference_forward(x, weight, gamma, beta, running_mean, running_var,
                            padding=1, bn_eps=BN_EPS)
    # bf16 MXU operands (f32 accumulation) -> slightly relaxed tolerances vs f32 reference.
    np.testing.assert_allclose(np.asarray(jnp.transpose(out_nhwc, (0, 3, 1, 2))),
                               np.asarray(ref), rtol=2e-2, atol=2e-2)
    np.testing.assert_allclose(np.asarray(out_nchw), np.asarray(ref),
                               rtol=2e-2, atol=2e-2)

    print("KERNEL_OK")
</pallas_src>

<mosaic_0001>
module attributes {stable_mosaic.version = 11 : i64} {
  func.func @conv_block_kernel(%arg0: i32, %arg1: memref<2x32x128xbf16, #tpu.memory_space<vmem>>, %arg2: memref<384x128xbf16, #tpu.memory_space<vmem>>, %arg3: memref<1x128xf32, #tpu.memory_space<vmem>>, %arg4: memref<2x16x128xf32, #tpu.memory_space<vmem>>) attributes {dimension_semantics = [#tpu.dimension_semantics<parallel>], iteration_bounds = array<i64: 1>, scalar_prefetch = 0 : i64, scratch_operands = 0 : i64, tpu.core_type = #tpu.core_type<tc>, window_params = [{transform_indices = @transform_0, window_bounds = array<i64: 2, 32, 128>}, {pipeline_mode = #tpu.pipeline_mode<synchronous>, transform_indices = @transform_1, window_bounds = array<i64: 384, 128>}, {pipeline_mode = #tpu.pipeline_mode<synchronous>, transform_indices = @transform_2, window_bounds = array<i64: 1, 128>}, {transform_indices = @transform_3, window_bounds = array<i64: 2, 16, 128>}]} {
    %c0 = arith.constant 0 : index
    %c0_0 = arith.constant 0 : index
    %c0_1 = arith.constant 0 : index
    %0 = vector.load %arg1[%c0, %c0_0, %c0_1] : memref<2x32x128xbf16, #tpu.memory_space<vmem>>, vector<2x32x128xbf16>
    %1 = vector.extract_strided_slice %0 {offsets = [0, 0, 0], sizes = [2, 16, 128], strides = [1, 1, 1]} : vector<2x32x128xbf16> to vector<2x16x128xbf16>
    %2 = vector.extract_strided_slice %0 {offsets = [0, 1, 0], sizes = [2, 16, 128], strides = [1, 1, 1]} : vector<2x32x128xbf16> to vector<2x16x128xbf16>
    %3 = vector.extract_strided_slice %0 {offsets = [0, 2, 0], sizes = [2, 16, 128], strides = [1, 1, 1]} : vector<2x32x128xbf16> to vector<2x16x128xbf16>
    %4 = tpu.concatenate %1, %2, %3 in 2 : vector<2x16x128xbf16>, vector<2x16x128xbf16>, vector<2x16x128xbf16> -> vector<2x16x384xbf16>
    %5 = vector.shape_cast %4 : vector<2x16x384xbf16> to vector<32x384xbf16>
    %c0_2 = arith.constant 0 : index
    %c0_3 = arith.constant 0 : index
    %6 = vector.load %arg2[%c0_2, %c0_3] : memref<384x128xbf16, #tpu.memory_space<vmem>>, vector<384x128xbf16>
    %cst = arith.constant dense<0.000000e+00> : vector<32x128xf32>
    %7 = tpu.matmul %5, %6, %cst {dimension_numbers = #tpu.dot_dimension_numbers<[1], [0], [0], [1], [0, 0, 1, 1], [], []>} : vector<32x384xbf16>, vector<384x128xbf16>, vector<32x128xf32> -> vector<32x128xf32>
    %c0_4 = arith.constant 0 : index
    %c0_5 = arith.constant 0 : index
    %8 = vector.load %arg3[%c0_4, %c0_5] : memref<1x128xf32, #tpu.memory_space<vmem>>, vector<1x128xf32>
    %9 = vector.broadcast %8 : vector<1x128xf32> to vector<32x128xf32>
    %10 = arith.addf %7, %9 : vector<32x128xf32>
    %cst_6 = arith.constant 0.000000e+00 : f32
    %11 = vector.broadcast %cst_6 : f32 to vector<32x128xf32>
    %12 = arith.maximumf %10, %11 : vector<32x128xf32>
    %13 = vector.shape_cast %12 : vector<32x128xf32> to vector<2x16x128xf32>
    %c0_7 = arith.constant 0 : index
    %c0_8 = arith.constant 0 : index
    %c0_9 = arith.constant 0 : index
    %14 = vector.load %arg4[%c0_7, %c0_8, %c0_9] : memref<2x16x128xf32, #tpu.memory_space<vmem>>, vector<2x16x128xf32>
    tpu.vector_store %arg4[%c0_7, %c0_8, %c0_9], %13 {strides = array<i32>} : memref<2x16x128xf32, #tpu.memory_space<vmem>>, vector<2x16x128xf32>,
    return
  }
  func.func @transform_0(%arg0: i32) -> (i32, i32, i32) {
    %c0_i32 = arith.constant 0 : i32
    %c0_i32_0 = arith.constant 0 : i32
    %c0_i32_1 = arith.constant 0 : i32
    return %arg0, %c0_i32, %c0_i32_0 : i32, i32, i32
  }
  func.func @transform_1(%arg0: i32) -> (i32, i32) {
    %c0_i32 = arith.constant 0 : i32
    %c0_i32_0 = arith.constant 0 : i32
    %c0_i32_1 = arith.constant 0 : i32
    return %c0_i32, %c0_i32_0 : i32, i32
  }
  func.func @transform_2(%arg0: i32) -> (i32, i32) {
    %c0_i32 = arith.constant 0 : i32
    %c0_i32_0 = arith.constant 0 : i32
    %c0_i32_1 = arith.constant 0 : i32
    return %c0_i32, %c0_i32_0 : i32, i32
  }
  func.func @transform_3(%arg0: i32) -> (i32, i32, i32) {
    %c0_i32 = arith.constant 0 : i32
    %c0_i32_0 = arith.constant 0 : i32
    %c0_i32_1 = arith.constant 0 : i32
    return %arg0, %c0_i32, %c0_i32_0 : i32, i32, i32
  }
}

</mosaic_0001>

<llo_original>
// kernel: conv_block_forward_nhwc.1
$region0: #{conv_block_forward_nhwc.1}
  #allocation0 [shape = 'u32[]', space=smem, size = 0x4, offset = 0x4, fixed_abs, tag = 'smem constant byte address 0x4 - core index']
  #allocation1 [shape = 'u32[144,128]{1,0:T(1,128)}', space=vmem, size = 0x12000, scoped, tag = 'internal scratch']
  %s0 = inlined_call_operand.vmem [shape: bf16[2,32,128], index: 0, kind: input, shape index: {}]
  %s1 = inlined_call_operand.vmem [shape: bf16[384,128], index: 1, kind: input, shape index: {}]
  %s2 = inlined_call_operand.vmem [shape: f32[1,128], index: 2, kind: input, shape index: {}]
  %s3 = inlined_call_operand.vmem [shape: f32[2,16,128], index: 3, kind: output, shape index: {}]
  %s4 = sld [smem:[#allocation0]]
  $region22: #{conv_block_forward_nhwc.1} parent=0
    _
  %s6 = ssub.s32 1, %s4
  %s7 = scalar_select 0, %s6, %s4
  // Predicated region
  $region2: #{conv_block_forward_nhwc.1} parent=0 // pred_check
    _
  $region3: #{conv_block_forward_nhwc.1} parent=0 // pred_check_branch
    %9 = sbr.rel (0) target = $region5
  $region4: #{conv_block_forward_nhwc.1} parent=0 // pred_region
    _
  $region5: #{conv_block_forward_nhwc.1} parent=0 // pred_fallthru
    _
  // Predicated region
  $region6: #{conv_block_forward_nhwc.1} parent=0 // pred_check
    _
  $region7: #{conv_block_forward_nhwc.1} parent=0 // pred_check_branch
    %11 = sbr.rel (0) target = $region9
  $region8: #{conv_block_forward_nhwc.1} parent=0 // pred_region
    _
  $region9: #{conv_block_forward_nhwc.1} parent=0 // pred_fallthru
    _
  // Predicated region
  $region10: #{conv_block_forward_nhwc.1} parent=0 // pred_check
    _
  $region11: #{conv_block_forward_nhwc.1} parent=0 // pred_check_branch
    %13 = sbr.rel (0) target = $region13
  $region12: #{conv_block_forward_nhwc.1} parent=0 // pred_region
    _
  $region13: #{conv_block_forward_nhwc.1} parent=0 // pred_fallthru
    _
  %v15 = vld [vmem:[%s0] sm:$0xf]
  %v16 = vld [vmem:[%s0 + $0x4] sm:$0xf]
  %v17 = vld [vmem:[%s0 + $0x8] sm:$0xf]
  %v18 = vld [vmem:[%s0 + $0x10] sm:$0xf]
  %v19 = vld [vmem:[%s0 + $0x14] sm:$0xf]
  %v20 = vld [vmem:[%s0 + $0x18] sm:$0xf]
  %v25 = vunpack.c.l.b16 %v15
  %v26 = vunpack.c.l.b16 %v16
  %v27 = vunpack.c.l.b16 %v18
  %v28 = vunpack.c.l.b16 %v19
  %v29 = vpack.c.b16 %v26, %v25
  %v30 = vpack.c.b16 %v28, %v27
  %v35 = vunpack.c.l.b16 %v17
  %v36 = vunpack.c.l.b16 %v20
  %v37 = vpack.c.b16 %v35, %v35
  %v38 = vpack.c.b16 %v36, %v36
  %vm39 = vsmask.f32 7424
  %v41 = vshrl.u32 %v29, 16
  %v43 = vshll.u32 %v29, 16
  %v45 = vrot.slane %v43, 1
  %v46 = vor.u32 %v41, %v45
  %v48 = vshll.u32 %v37, 16
  %v50 = vrot.slane %v48, 1
  %v51 = vsel %vm39, %v46, %v50
  %v53 = vshrl.u32 %v30, 16
  %v55 = vshll.u32 %v30, 16
  %v57 = vrot.slane %v55, 1
  %v58 = vor.u32 %v53, %v57
  %v60 = vshll.u32 %v38, 16
  %v62 = vrot.slane %v60, 1
  %v63 = vsel %vm39, %v58, %v62
  %vm66 = vcmask 1046528
  %v67 = vrot.slane %v29, 1
  %v68 = vrot.slane %v37, 1
  %v69 = vsel %vm66, %v67, %v68
  %v70 = vrot.slane %v30, 1
  %v71 = vrot.slane %v38, 1
  %v72 = vsel %vm66, %v70, %v71
  %v75 = vld [vmem:[%s1] sm:$0xf]
  %v76 = vld [vmem:[%s1 + $0x4] sm:$0xf]
  %v77 = vld [vmem:[%s1 + $0x8] sm:$0xf]
  %v78 = vld [vmem:[%s1 + $0xc] sm:$0xf]
  %v79 = vld [vmem:[%s1 + $0x10] sm:$0xf]
  %v80 = vld [vmem:[%s1 + $0x14] sm:$0xf]
  %v81 = vld [vmem:[%s1 + $0x18] sm:$0xf]
  %v82 = vld [vmem:[%s1 + $0x1c] sm:$0xf]
  %v83 = vld [vmem:[%s1 + $0x20] sm:$0xf]
  %v84 = vld [vmem:[%s1 + $0x24] sm:$0xf]
  %v85 = vld [vmem:[%s1 + $0x28] sm:$0xf]
  %v86 = vld [vmem:[%s1 + $0x2c] sm:$0xf]
  %v87 = vld [vmem:[%s1 + $0x30] sm:$0xf]
  %v88 = vld [vmem:[%s1 + $0x34] sm:$0xf]
  %v89 = vld [vmem:[%s1 + $0x38] sm:$0xf]
  %v90 = vld [vmem:[%s1 + $0x3c] sm:$0xf]
  %v91 = vld [vmem:[%s1 + $0x40] sm:$0xf]
  %v92 = vld [vmem:[%s1 + $0x44] sm:$0xf]
  %v93 = vld [vmem:[%s1 + $0x48] sm:$0xf]
  %v94 = vld [vmem:[%s1 + $0x4c] sm:$0xf]
  %v95 = vld [vmem:[%s1 + $0x50] sm:$0xf]
  %v96 = vld [vmem:[%s1 + $0x54] sm:$0xf]
  %v97 = vld [vmem:[%s1 + $0x58] sm:$0xf]
  %v98 = vld [vmem:[%s1 + $0x5c] sm:$0xf]
  %v99 = vld [vmem:[%s1 + $0x60] sm:$0xf]
  %v100 = vld [vmem:[%s1 + $0x64] sm:$0xf]
  %v101 = vld [vmem:[%s1 + $0x68] sm:$0xf]
  %v102 = vld [vmem:[%s1 + $0x6c] sm:$0xf]
  %v103 = vld [vmem:[%s1 + $0x70] sm:$0xf]
  %v104 = vld [vmem:[%s1 + $0x74] sm:$0xf]
  %v105 = vld [vmem:[%s1 + $0x78] sm:$0xf]
  %v106 = vld [vmem:[%s1 + $0x7c] sm:$0xf]
  %v107 = vld [vmem:[%s1 + $0x80] sm:$0xf]
  %v108 = vld [vmem:[%s1 + $0x84] sm:$0xf]
  %v109 = vld [vmem:[%s1 + $0x88] sm:$0xf]
  %v110 = vld [vmem:[%s1 + $0x8c] sm:$0xf]
  %v111 = vld [vmem:[%s1 + $0x90] sm:$0xf]
  %v112 = vld [vmem:[%s1 + $0x94] sm:$0xf]
  %v113 = vld [vmem:[%s1 + $0x98] sm:$0xf]
  %v114 = vld [vmem:[%s1 + $0x9c] sm:$0xf]
  %v115 = vld [vmem:[%s1 + $0xa0] sm:$0xf]
  %v116 = vld [vmem:[%s1 + $0xa4] sm:$0xf]
  %v117 = vld [vmem:[%s1 + $0xa8] sm:$0xf]
  %v118 = vld [vmem:[%s1 + $0xac] sm:$0xf]
  %v119 = vld [vmem:[%s1 + $0xb0] sm:$0xf]
  %v120 = vld [vmem:[%s1 + $0xb4] sm:$0xf]
  %v121 = vld [vmem:[%s1 + $0xb8] sm:$0xf]
  %v122 = vld [vmem:[%s1 + $0xbc] sm:$0xf]
  %v123 = vld [vmem:[%s2] sm:$0x1]
  %v125 = vlaneseq
  %v126 = vshrl.u32 %v125, 7
  %v127 = vsub.s32 0, %v126
  %v128 = vrot.slane %v123, %v127
  %v178 = vunpack.c.l.b16 %v75
  %v179 = vunpack.c.l.b16 %v76
  %v180 = vunpack.c.l.b16 %v77
  %v181 = vunpack.c.l.b16 %v78
  %v182 = vunpack.c.l.b16 %v79
  %v183 = vunpack.c.l.b16 %v80
  %v184 = vunpack.c.l.b16 %v81
  %v185 = vunpack.c.l.b16 %v82
  %v186 = vunpack.c.l.b16 %v83
  %v187 = vunpack.c.l.b16 %v84
  %v188 = vunpack.c.l.b16 %v85
  %v189 = vunpack.c.l.b16 %v86
  %v190 = vunpack.c.l.b16 %v87
  %v191 = vunpack.c.l.b16 %v88
  %v192 = vunpack.c.l.b16 %v89
  %v193 = vunpack.c.l.b16 %v90
  %v194 = vunpack.c.l.b16 %v91
  %v195 = vunpack.c.l.b16 %v92
  %v196 = vunpack.c.l.b16 %v93
  %v197 = vunpack.c.l.b16 %v94
  %v198 = vunpack.c.l.b16 %v95
  %v199 = vunpack.c.l.b16 %v96
  %v200 = vunpack.c.l.b16 %v97
  %v201 = vunpack.c.l.b16 %v98
  %v202 = vunpack.c.l.b16 %v99
  %v203 = vunpack.c.l.b16 %v100
  %v204 = vunpack.c.l.b16 %v101
  %v205 = vunpack.c.l.b16 %v102
  %v206 = vunpack.c.l.b16 %v103
  %v207 = vunpack.c.l.b16 %v104
  %v208 = vunpack.c.l.b16 %v105
  %v209 = vunpack.c.l.b16 %v106
  %v210 = vunpack.c.l.b16 %v107
  %v211 = vunpack.c.l.b16 %v108
  %v212 = vunpack.c.l.b16 %v109
  %v213 = vunpack.c.l.b16 %v110
  %v214 = vunpack.c.l.b16 %v111
  %v215 = vunpack.c.l.b16 %v112
  %v216 = vunpack.c.l.b16 %v113
  %v217 = vunpack.c.l.b16 %v114
  %v218 = vunpack.c.l.b16 %v115
  %v219 = vunpack.c.l.b16 %v116
  %v220 = vunpack.c.l.b16 %v117
  %v221 = vunpack.c.l.b16 %v118
  %v222 = vunpack.c.l.b16 %v119
  %v223 = vunpack.c.l.b16 %v120
  %v224 = vunpack.c.l.b16 %v121
  %v225 = vunpack.c.l.b16 %v122
  %v226 = vpack.c.b16 %v179, %v178
  %v227 = vpack.c.b16 %v181, %v180
  %v228 = vpack.c.b16 %v183, %v182
  %v229 = vpack.c.b16 %v185, %v184
  %v230 = vpack.c.b16 %v187, %v186
  %v231 = vpack.c.b16 %v189, %v188
  %v232 = vpack.c.b16 %v191, %v190
  %v233 = vpack.c.b16 %v193, %v192
  %v234 = vpack.c.b16 %v195, %v194
  %v235 = vpack.c.b16 %v197, %v196
  %v236 = vpack.c.b16 %v199, %v198
  %v237 = vpack.c.b16 %v201, %v200
  %v238 = vpack.c.b16 %v203, %v202
  %v239 = vpack.c.b16 %v205, %v204
  %v240 = vpack.c.b16 %v207, %v206
  %v241 = vpack.c.b16 %v209, %v208
  %v242 = vpack.c.b16 %v211, %v210
  %v243 = vpack.c.b16 %v213, %v212
  %v244 = vpack.c.b16 %v215, %v214
  %v245 = vpack.c.b16 %v217, %v216
  %v246 = vpack.c.b16 %v219, %v218
  %v247 = vpack.c.b16 %v221, %v220
  %v248 = vpack.c.b16 %v223, %v222
  %v249 = vpack.c.b16 %v225, %v224
  %274 = vmatprep.subr.bf16.mxu0 0
  %275 = vmatpush1.bf16.msra.mxu0 %v233
  %276 = vmatprep.subr.bf16.mxu0 0
  %277 = vmatpush1.bf16.msra.mxu0 %v232
  %278 = vmatprep.subr.bf16.mxu0 0
  %279 = vmatpush1.bf16.msra.mxu0 %v231
  %280 = vmatprep.subr.bf16.mxu0 0
  %281 = vmatpush1.bf16.msra.mxu0 %v230
  %282 = vmatprep.subr.bf16.mxu0 0
  %283 = vmatpush1.bf16.msra.mxu0 %v229
  %284 = vmatprep.subr.bf16.mxu0 0
  %285 = vmatpush1.bf16.msra.mxu0 %v228
  %286 = vmatprep.subr.bf16.mxu0 0
  %287 = vmatpush1.bf16.msra.mxu0 %v227
  %288 = vmatprep.subr.bf16.mxu0 0
  %289 = vmatpush1.bf16.msra.mxu0 %v226
  %290 = vmatprep.subr.bf16.mxu0 0
  %291 = vmatpush2.bf16.msra.mxu0 %v241
  %292 = vmatprep.subr.bf16.mxu0 0
  %293 = vmatpush2.bf16.msra.mxu0 %v240
  %294 = vmatprep.subr.bf16.mxu0 0
  %295 = vmatpush2.bf16.msra.mxu0 %v239
  %296 = vmatprep.subr.bf16.mxu0 0
  %297 = vmatpush2.bf16.msra.mxu0 %v238
  %298 = vmatprep.subr.bf16.mxu0 0
  %299 = vmatpush2.bf16.msra.mxu0 %v237
  %300 = vmatprep.subr.bf16.mxu0 0
  %301 = vmatpush2.bf16.msra.mxu0 %v236
  %302 = vmatprep.subr.bf16.mxu0 0
  %303 = vmatpush2.bf16.msra.mxu0 %v235
  %304 = vmatprep.subr.bf16.mxu0 0
  %305 = vmatpush2.bf16.msra.mxu0 %v234
  %306 = vmatprep.mubr.bf16.mxu0 %v51
  %307 = vmatmul.mubr.bf16.gmra.mxu0 %v29
  %v308 = vpop.f32.mrf.mxu0
  %v309 = vadd.f32 %v128, %v308
  %v310 = vpop.f32.mrf.mxu0
  %v311 = vpop.f32.mrf.mxu0
  %v312 = vadd.f32 %v128, %v311
  %v313 = vpop.f32.mrf.mxu0
  %314 = vmatprep.mubr.bf16.mxu0 %v63
  %315 = vmatmul.mubr.bf16.gmra.mxu0 %v30
  %v316 = vpop.f32.mrf.mxu0
  %v317 = vadd.f32 %v128, %v316
  %v318 = vpop.f32.mrf.mxu0
  %v319 = vpop.f32.mrf.mxu0
  %v320 = vadd.f32 %v128, %v319
  %v321 = vpop.f32.mrf.mxu0
  %322 = vdwg.mxu0
  %323 = vmatprep.subr.bf16.mxu0 0
  %324 = vmatpush1.bf16.msra.mxu0 %v249
  %325 = vmatprep.subr.bf16.mxu0 0
  %326 = vmatpush1.bf16.msra.mxu0 %v248
  %327 = vmatprep.subr.bf16.mxu0 0
  %328 = vmatpush1.bf16.msra.mxu0 %v247
  %329 = vmatprep.subr.bf16.mxu0 0
  %330 = vmatpush1.bf16.msra.mxu0 %v246
  %331 = vmatprep.subr.bf16.mxu0 0
  %332 = vmatpush1.bf16.msra.mxu0 %v245
  %333 = vmatprep.subr.bf16.mxu0 0
  %334 = vmatpush1.bf16.msra.mxu0 %v244
  %335 = vmatprep.subr.bf16.mxu0 0
  %336 = vmatpush1.bf16.msra.mxu0 %v243
  %337 = vmatprep.subr.bf16.mxu0 0
  %338 = vmatpush1.bf16.msra.mxu0 %v242
  %339 = vmatprep.subr.bf16.mxu0 0
  %340 = vmatpush2.bf16.msra.mxu0 0
  %341 = vmatprep.subr.bf16.mxu0 0
  %342 = vmatpush2.bf16.msra.mxu0 0
  %343 = vmatprep.subr.bf16.mxu0 0
  %344 = vmatpush2.bf16.msra.mxu0 0
  %345 = vmatprep.subr.bf16.mxu0 0
  %346 = vmatpush2.bf16.msra.mxu0 0
  %347 = vmatprep.subr.bf16.mxu0 0
  %348 = vmatpush2.bf16.msra.mxu0 0
  %349 = vmatprep.subr.bf16.mxu0 0
  %350 = vmatpush2.bf16.msra.mxu0 0
  %351 = vmatprep.subr.bf16.mxu0 0
  %352 = vmatpush2.bf16.msra.mxu0 0
  %353 = vmatprep.subr.bf16.mxu0 0
  %354 = vmatpush2.bf16.msra.mxu0 0
  %355 = vmatprep.mubr.bf16.mxu0 0
  %356 = vmatmul.mubr.bf16.gmra.mxu0 %v69
  %v357 = vpop.f32.mrf.mxu0
  %v358 = vadd.f32 %v309, %v357
  %v359 = vpop.f32.mrf.mxu0
  %v360 = vpop.f32.mrf.mxu0
  %v361 = vadd.f32 %v312, %v360
  %v362 = vpop.f32.mrf.mxu0
  %363 = vmatprep.mubr.bf16.mxu0 0
  %364 = vmatmul.mubr.bf16.gmra.mxu0 %v72
  %v365 = vpop.f32.mrf.mxu0
  %v366 = vadd.f32 %v317, %v365
  %v367 = vpop.f32.mrf.mxu0
  %v368 = vpop.f32.mrf.mxu0
  %v369 = vadd.f32 %v320, %v368
  %v370 = vpop.f32.mrf.mxu0
  %371 = vdwg.mxu0
  %v372 = vmax.f32 %v358, 0.0
  %v373 = vmax.f32 %v361, 0.0
  %v374 = vmax.f32 %v366, 0.0
  %v375 = vmax.f32 %v369, 0.0
  %376 = vst [vmem:[%s3] sm:$0xff] %v372
  %377 = vst [vmem:[%s3 + $0x8] sm:$0xff] %v373
  %378 = vst [vmem:[%s3 + $0x10] sm:$0xff] %v374
  %379 = vst [vmem:[%s3 + $0x18] sm:$0xff] %v375
  // Predicated region
  $region14: #{conv_block_forward_nhwc.1} parent=0 // pred_check
    _
  $region15: #{conv_block_forward_nhwc.1} parent=0 // pred_check_branch
    %381 = sbr.rel (0) target = $region17
  $region16: #{conv_block_forward_nhwc.1} parent=0 // pred_region
    _
  $region17: #{conv_block_forward_nhwc.1} parent=0 // pred_fallthru
    _
  // Predicated region
  $region18: #{conv_block_forward_nhwc.1} parent=0 // pred_check
    _
  $region19: #{conv_block_forward_nhwc.1} parent=0 // pred_check_branch
    %383 = sbr.rel (0) target = $region21
  $region20: #{conv_block_forward_nhwc.1} parent=0 // pred_region
    _
  $region21: #{conv_block_forward_nhwc.1} parent=0 // pred_fallthru
    _

</llo_original>
